<compile_context>
chip_gen: v5e
topology: v5e:2x2
jax: 0.10.0
libtpu: 0.0.40
codegen_flags: <defaults>
</compile_context>

<pallas_src>
import functools

import jax
import jax.numpy as jnp
from jax.experimental import pallas as pl
from jax.experimental.pallas import tpu as pltpu

LANE = 128


def _round_up(x, m):
    return (x + m - 1) // m * m


def _cdiv(a, b):
    return (a + b - 1) // b


def _tpu_generation():
    """Best-effort TPU generation from device_kind; conservative default."""
    try:
        kind = jax.devices()[0].device_kind.lower().replace(" ", "")
    except Exception:  # pragma: no cover - e.g. no devices yet
        return 7
    for g in (7, 6, 5, 4):
        if f"v{g}" in kind or f"tpu{g}" in kind:
            return g
    return 7  # unknown: assume the smallest VMEM (v7x-like) to stay safe


# ---------------------------------------------------------------------------
# Pallas kernel: one (tile_g, k_chunk) block of the shared MLP
# (1x1 conv + folded BatchNorm + ReLU) x n_layers, then a running max over the
# nsample (K) grid axis kept in a VMEM scratch accumulator.
# ---------------------------------------------------------------------------
def _shared_mlp_maxpool_kernel(n_layers, use_bf16_epi, x_ref, *refs):
    w_refs = refs[:n_layers]
    b_refs = refs[n_layers:2 * n_layers]
    o_ref = refs[2 * n_layers]
    acc_ref = refs[2 * n_layers + 1]

    k_step = pl.program_id(1)

    @pl.when(k_step == 0)
    def _():
        acc_ref[...] = jnp.full(acc_ref.shape, -jnp.inf, acc_ref.dtype)

    tile_g, kc, c0 = x_ref.shape
    c_out_pad = o_ref.shape[-1]

    # Hoisted, exact-padded weight/bias loads (once per invocation, no
    # sub-(8,128) slicing -> no XLU relayout copies).
    ws = [w[...] for w in w_refs]
    bs = [b[...] for b in b_refs]

    # Merge (tile_g, kc) into the sublane dim; lane dim preserved -> free.
    h = x_ref[...].reshape(tile_g * kc, c0)                     # bf16
    for l in range(n_layers):
        lhs = h if h.dtype == jnp.bfloat16 else h.astype(jnp.bfloat16)
        h = jnp.dot(lhs, ws[l], preferred_element_type=jnp.float32)
        if use_bf16_epi:
            # v6e/v7x: bf16 VALU -> cast accumulator once, bias+ReLU in bf16.
            h = jnp.maximum(h.astype(jnp.bfloat16) + bs[l], 0)
        else:
            # v5e/v4: no bf16 VPU -> keep the epilogue in f32.
            h = jnp.maximum(h + bs[l], 0)

    # Chunk max over this K slice, running max kept in f32 (bit-stable pool).
    m = jnp.max(h.reshape(tile_g, kc, c_out_pad), axis=1).astype(jnp.float32)
    acc_ref[...] = jnp.maximum(acc_ref[...], m)

    @pl.when(k_step == pl.num_programs(1) - 1)
    def _():
        o_ref[...] = acc_ref[...].astype(o_ref.dtype)


def shared_mlp_maxpool(grouped, weights, biases, *, tile_g=512, k_chunk=32):
    """grouped: (G, K, C0) -> (G, C_last) f32 via Pallas kernel."""
    G, K, C0 = grouped.shape
    grouped = grouped.astype(jnp.bfloat16)            # no-op if already bf16
    n_layers = len(weights)
    layer_dims = tuple((int(w.shape[0]), int(w.shape[1])) for w in weights)
    assert layer_dims[0][0] == C0
    for l in range(1, n_layers):
        assert layer_dims[l][0] == layer_dims[l - 1][1]
    c_out = layer_dims[-1][1]

    # --- generation-aware VMEM budget / compute dtype ------------------------
    gen = _tpu_generation()
    use_bf16_epi = gen >= 6                  # bf16 VALU on v6e / v7x only
    if gen >= 7:                             # 64 MiB VMEM per TensorCore
        vmem_limit, budget = 48 << 20, 26 << 20
    else:                                    # v4/v5e/v6e: 128 MiB VMEM
        vmem_limit, budget = 100 << 20, 56 << 20

    # --- exact per-layer padded dims: ci follows previous co_pad, co -> x128 -
    padded_dims = []
    prev_pad = C0
    for (_, co) in layer_dims:
        co_pad = _round_up(co, LANE)
        padded_dims.append((prev_pad, co_pad))
        prev_pad = co_pad
    c_out_pad = padded_dims[-1][1]
    max_co_pad = max(co_p for _, co_p in padded_dims)

    # --- K axis: pick a k_chunk (multiple of 16) dividing the padded K -------
    K16 = _round_up(K, 16)
    kc_sel = 16
    for cand in range(16, K16 + 1, 16):
        if K16 % cand == 0 and cand <= max(16, k_chunk):
            kc_sel = cand
    k_chunk = kc_sel
    if K16 != K:
        # repeat the last neighbour -- repeats do not change the K-max
        grouped = jnp.concatenate(
            [grouped,
             jnp.broadcast_to(grouped[:, -1:, :], (G, K16 - K, C0))], axis=1)
    K_pad = K16

    # --- tile_g selection with *padded* footprints ---------------------------
    c0_lane = _round_up(C0, LANE)
    act_bytes = 2 if use_bf16_epi else 4
    b_bytes = 2 if use_bf16_epi else 4
    fixed = 0
    for ci_p, co_p in padded_dims:           # grid-invariant refs (x2 buffers)
        fixed += 2 * (ci_p * co_p * 2)                  # bf16 weights
        fixed += 2 * (8 * co_p * b_bytes)               # bias (sublane-padded)
    per_g = 2 * (k_chunk * c0_lane * 2)                 # input block, x2 bufs
    per_g += k_chunk * max_co_pad * (act_bytes + 4)     # live act (dot+epilogue)
    per_g += 2 * (c_out_pad * 4)                        # output block, x2 bufs
    per_g += 2 * (c_out_pad * 4)                        # acc scratch + chunk max
    tile_g_cap = max(8, ((budget - fixed) // per_g) // 8 * 8)
    tile_g = max(8, min(tile_g, tile_g_cap, _round_up(G, 8)))

    # v7x: keep the number of "parallel" grid steps even (2 TensorCores).
    if gen >= 7 and G > 8:
        while (_cdiv(G, tile_g) % 2 == 1) and tile_g > 8:
            tile_g -= 8

    G_pad = _round_up(G, tile_g)
    if G_pad != G:
        grouped = jnp.concatenate(
            [grouped, jnp.zeros((G_pad - G, K_pad, C0), grouped.dtype)], axis=0)

    # --- per-layer exact-padded weight / bias packs ---------------------------
    b_dtype = jnp.bfloat16 if use_bf16_epi else jnp.float32
    w_list, b_list = [], []
    for (w, b), (ci_p, co_p) in zip(zip(weights, biases), padded_dims):
        ci, co = int(w.shape[0]), int(w.shape[1])
        wp = jnp.zeros((ci_p, co_p), jnp.bfloat16)
        wp = wp.at[:ci, :co].set(w.astype(jnp.bfloat16))
        bp = jnp.zeros((1, co_p), b_dtype)
        bp = bp.at[0, :co].set(b.astype(b_dtype))
        w_list.append(wp)
        b_list.append(bp)

    # NOTE: weight/bias blocks are grid-invariant; Mosaic collapses the revisit
    # for constant index_maps, so no explicit single-buffering is requested.
    out = pl.pallas_call(
        functools.partial(_shared_mlp_maxpool_kernel, n_layers, use_bf16_epi),
        out_shape=jax.ShapeDtypeStruct((G_pad, c_out_pad), jnp.float32),
        grid_spec=pltpu.PrefetchScalarGridSpec(
            num_scalar_prefetch=0,
            grid=(G_pad // tile_g, K_pad // k_chunk),
            in_specs=(
                [pl.BlockSpec((tile_g, k_chunk, C0), lambda g, k: (g, k, 0))]
                + [pl.BlockSpec(w.shape, lambda g, k: (0, 0)) for w in w_list]
                + [pl.BlockSpec(b.shape, lambda g, k: (0, 0)) for b in b_list]
            ),
            out_specs=pl.BlockSpec((tile_g, c_out_pad), lambda g, k: (g, 0)),
            scratch_shapes=[pltpu.VMEM((tile_g, c_out_pad), jnp.float32)],
        ),
        compiler_params=pltpu.CompilerParams(
            dimension_semantics=("parallel", "arbitrary"),
            vmem_limit_bytes=vmem_limit,
        ),
    )(grouped, *w_list, *b_list)
    return out[:G, :c_out]


# ---------------------------------------------------------------------------
# Plain-JAX glue: furthest point sampling + ball-query grouping.
# TODO(synk): at production point counts the ball-query gather should be fused
# into the Pallas kernel via scalar-prefetched indices / manual DMA gather so
# the (B,S,K,3+C) grouped tensor never round-trips through HBM.
# ---------------------------------------------------------------------------
def furthest_point_sample(xyz, npoint):
    """xyz: (B, N, 3) -> (B, npoint) int32 indices (standard FPS, seed idx 0)."""
    _, N, _ = xyz.shape

    def single(pts):
        def body(i, state):
            idxs, dists, last = state
            d = jnp.sum((pts - pts[last]) ** 2, axis=-1)
            dists = jnp.minimum(dists, d)
            nxt = jnp.argmax(dists).astype(jnp.int32)
            idxs = idxs.at[i].set(nxt)
            return idxs, dists, nxt

        idxs = jnp.zeros((npoint,), jnp.int32)
        dists = jnp.full((N,), 1e10, jnp.float32)
        idxs, _, _ = jax.lax.fori_loop(1, npoint, body,
                                       (idxs, dists, jnp.int32(0)))
        return idxs

    return jax.vmap(single)(xyz)


def ball_query_group(radius, nsample, xyz, new_xyz, features):
    """QueryAndGroup: (B, S, nsample, 3 + C) relative-xyz ++ features (bf16)."""
    B, N, _ = xyz.shape
    d2 = jnp.sum((new_xyz[:, :, None, :] - xyz[:, None, :, :]) ** 2, axis=-1)
    within = d2 <= radius * radius
    arange = jnp.arange(N, dtype=jnp.int32)
    # first nsample in-radius indices in ascending index order (top_k on a
    # negated key; cheaper than a full argsort over N)
    neg_key = jnp.where(within, -arange[None, None, :],
                        -(arange[None, None, :] + N))
    _, idx = jax.lax.top_k(neg_key, nsample)
    idx = idx.astype(jnp.int32)
    in_r = jnp.take_along_axis(within, idx, axis=-1)
    # pad with first in-ball idx (index 0 when the ball is empty, as in the
    # reference CUDA ball_query)
    idx = jnp.where(in_r, idx, idx[..., :1])

    batch = jnp.arange(B, dtype=jnp.int32)[:, None, None]
    # produce the grouped tensor directly in bf16 (cast fuses into the gather),
    # avoiding a separate HBM read+write of the K-expanded tensor later.
    xyz_b = xyz.astype(jnp.bfloat16)
    new_xyz_b = new_xyz.astype(jnp.bfloat16)
    feat_b = features.astype(jnp.bfloat16)
    grouped_xyz = xyz_b[batch, idx] - new_xyz_b[:, :, None, :]   # (B,S,K,3)
    grouped_feat = feat_b[batch, idx]                            # (B,S,K,C)
    return jnp.concatenate([grouped_xyz, grouped_feat], axis=-1)


# ---------------------------------------------------------------------------
# Module: deterministic synthetic parameters, forward matching the reference.
# ---------------------------------------------------------------------------
class PointnetSAModule:
    def __init__(self, npoint, radii, nsamples, mlp_specs, key):
        # TODO(synk): group-all branch (npoint is None) of the base class not
        # implemented; only the sampled (npoint is not None) path is covered.
        assert npoint is not None
        self.npoint = npoint
        self.radii = radii
        self.nsamples = nsamples
        self.weights = []   # per grouper: list of (C_in, C_out) effective weights
        self.biases = []    # per grouper: list of (C_out,) effective biases
        eps = 1e-5
        for spec in mlp_specs:
            ws, bs = [], []
            for ci, co in zip(spec[:-1], spec[1:]):
                key, kw = jax.random.split(key)
                w = jax.random.normal(kw, (ci, co), jnp.float32) * 0.1
                gamma = jnp.ones((co,), jnp.float32)
                beta = 0.01 * jnp.arange(co, dtype=jnp.float32)
                run_mean = jnp.zeros((co,), jnp.float32)
                run_var = jnp.ones((co,), jnp.float32)
                scale = gamma / jnp.sqrt(run_var + eps)    # fold BN (eval mode)
                ws.append(w * scale[None, :])
                bs.append(beta - run_mean * scale)
            self.weights.append(ws)
            self.biases.append(bs)

    def __call__(self, xyz, normal, features):
        B = xyz.shape[0]
        fps_idx = furthest_point_sample(xyz, self.npoint)           # (B, S)
        batch = jnp.arange(B, dtype=jnp.int32)[:, None]
        new_xyz = xyz[batch, fps_idx]                                # (B, S, 3)
        new_normal = normal[batch, fps_idx]                          # (B, S, 3)

        new_features_list = []
        for i in range(len(self.radii)):
            # TODO(synk): the abstract base's grouper also receives `normal`
            # and `fps_idx`, and its mlp receives `new_normal`; their concrete
            # use is undefined in _PointnetSAModuleBase, so the standard
            # QueryAndGroup + SharedMLP(Conv1x1+BN+ReLU) + max-pool is used.
            grouped = ball_query_group(self.radii[i], self.nsamples[i],
                                       xyz, new_xyz, features)       # (B,S,K,3+C)
            Bx, S, K, C0 = grouped.shape
            grouped = grouped.reshape(Bx * S, K, C0)
            out = shared_mlp_maxpool(grouped, self.weights[i],
                                     self.biases[i])                 # (B*S, Co)
            out = out.reshape(Bx, S, -1).transpose(0, 2, 1)          # (B, Co, S)
            new_features_list.append(out)

        return new_xyz, new_normal, jnp.concatenate(new_features_list, axis=1)


if __name__ == "__main__":
    key = jax.random.PRNGKey(0)
    B, N, Cf = 2, 32, 4
    npoint, nsample = 8, 16

    k1, k2, k3, kw = jax.random.split(key, 4)
    xyz = jax.random.uniform(k1, (B, N, 3), jnp.float32)
    normal = jax.random.normal(k2, (B, N, 3), jnp.float32)
    normal = normal / jnp.linalg.norm(normal, axis=-1, keepdims=True)
    features = jax.random.normal(k3, (B, N, Cf), jnp.float32)

    module = PointnetSAModule(
        npoint=npoint,
        radii=[0.3, 0.6],
        nsamples=[nsample, nsample],
        mlp_specs=[[3 + Cf, 16, 32], [3 + Cf, 16, 32]],
        key=kw,
    )

    new_xyz, new_normal, new_features = module(xyz, normal, features)
    jax.block_until_ready((new_xyz, new_normal, new_features))

    assert new_xyz.shape == (B, npoint, 3)
    assert new_normal.shape == (B, npoint, 3)
    assert new_features.shape == (B, 32 + 32, npoint)
    assert bool(jnp.all(jnp.isfinite(new_features)))
    print("KERNEL_OK")
</pallas_src>

<mosaic_0001>
module attributes {stable_mosaic.version = 11 : i64} {
  func.func @_shared_mlp_maxpool_kernel(%arg0: i32, %arg1: i32, %arg2: memref<8x16x7xbf16, #tpu.memory_space<vmem>>, %arg3: memref<7x128xbf16, #tpu.memory_space<vmem>>, %arg4: memref<128x128xbf16, #tpu.memory_space<vmem>>, %arg5: memref<1x128xbf16, #tpu.memory_space<vmem>>, %arg6: memref<1x128xbf16, #tpu.memory_space<vmem>>, %arg7: memref<8x128xf32, #tpu.memory_space<vmem>>, %arg8: memref<8x128xf32, #tpu.memory_space<vmem>>) attributes {dimension_semantics = [#tpu.dimension_semantics<parallel>, #tpu.dimension_semantics<arbitrary>], iteration_bounds = array<i64: 2, 1>, scalar_prefetch = 0 : i64, scratch_operands = 1 : i64, tpu.core_type = #tpu.core_type<tc>, window_params = [{transform_indices = @transform_0, window_bounds = array<i64: 8, 16, 7>}, {pipeline_mode = #tpu.pipeline_mode<synchronous>, transform_indices = @transform_1, window_bounds = array<i64: 7, 128>}, {pipeline_mode = #tpu.pipeline_mode<synchronous>, transform_indices = @transform_2, window_bounds = array<i64: 128, 128>}, {pipeline_mode = #tpu.pipeline_mode<synchronous>, transform_indices = @transform_3, window_bounds = array<i64: 1, 128>}, {pipeline_mode = #tpu.pipeline_mode<synchronous>, transform_indices = @transform_4, window_bounds = array<i64: 1, 128>}, {transform_indices = @transform_5, window_bounds = array<i64: 8, 128>}]} {
    %c0_i32 = arith.constant 0 : i32
    %0 = arith.cmpi eq, %arg1, %c0_i32 : i32
    %1 = arith.extui %0 : i1 to i32
    %c0_i32_0 = arith.constant 0 : i32
    %2 = arith.cmpi ne, %1, %c0_i32_0 : i32
    scf.if %2 {
      %cst_21 = arith.constant 0xFF800000 : f32
      %30 = vector.broadcast %cst_21 : f32 to vector<8x128xf32>
      %c0_22 = arith.constant 0 : index
      %c0_23 = arith.constant 0 : index
      %31 = vector.load %arg8[%c0_22, %c0_23] : memref<8x128xf32, #tpu.memory_space<vmem>>, vector<8x128xf32>
      tpu.vector_store %arg8[%c0_22, %c0_23], %30 {strides = array<i32>} : memref<8x128xf32, #tpu.memory_space<vmem>>, vector<8x128xf32>,
    } else {
    }
    %c0 = arith.constant 0 : index
    %c0_1 = arith.constant 0 : index
    %3 = vector.load %arg3[%c0, %c0_1] : memref<7x128xbf16, #tpu.memory_space<vmem>>, vector<7x128xbf16>
    %c0_2 = arith.constant 0 : index
    %c0_3 = arith.constant 0 : index
    %4 = vector.load %arg4[%c0_2, %c0_3] : memref<128x128xbf16, #tpu.memory_space<vmem>>, vector<128x128xbf16>
    %c0_4 = arith.constant 0 : index
    %c0_5 = arith.constant 0 : index
    %5 = vector.load %arg5[%c0_4, %c0_5] : memref<1x128xbf16, #tpu.memory_space<vmem>>, vector<1x128xbf16>
    %c0_6 = arith.constant 0 : index
    %c0_7 = arith.constant 0 : index
    %6 = vector.load %arg6[%c0_6, %c0_7] : memref<1x128xbf16, #tpu.memory_space<vmem>>, vector<1x128xbf16>
    %c0_8 = arith.constant 0 : index
    %c0_9 = arith.constant 0 : index
    %c0_10 = arith.constant 0 : index
    %7 = vector.load %arg2[%c0_8, %c0_9, %c0_10] : memref<8x16x7xbf16, #tpu.memory_space<vmem>>, vector<8x16x7xbf16>
    %8 = vector.shape_cast %7 : vector<8x16x7xbf16> to vector<128x7xbf16>
    %cst = arith.constant dense<0.000000e+00> : vector<128x128xf32>
    %9 = tpu.matmul %8, %3, %cst {dimension_numbers = #tpu.dot_dimension_numbers<[1], [0], [0], [1], [0, 0, 1, 1], [], []>} : vector<128x7xbf16>, vector<7x128xbf16>, vector<128x128xf32> -> vector<128x128xf32>
    %10 = arith.truncf %9 : vector<128x128xf32> to vector<128x128xbf16>
    %11 = vector.broadcast %5 : vector<1x128xbf16> to vector<128x128xbf16>
    %12 = arith.addf %10, %11 : vector<128x128xbf16>
    %cst_11 = arith.constant 0.000000e+00 : bf16
    %13 = vector.broadcast %cst_11 : bf16 to vector<128x128xbf16>
    %14 = arith.maximumf %12, %13 : vector<128x128xbf16>
    %cst_12 = arith.constant dense<0.000000e+00> : vector<128x128xf32>
    %15 = tpu.matmul %14, %4, %cst_12 {dimension_numbers = #tpu.dot_dimension_numbers<[1], [0], [0], [1], [0, 0, 1, 1], [], []>} : vector<128x128xbf16>, vector<128x128xbf16>, vector<128x128xf32> -> vector<128x128xf32>
    %16 = arith.truncf %15 : vector<128x128xf32> to vector<128x128xbf16>
    %17 = vector.broadcast %6 : vector<1x128xbf16> to vector<128x128xbf16>
    %18 = arith.addf %16, %17 : vector<128x128xbf16>
    %cst_13 = arith.constant 0.000000e+00 : bf16
    %19 = vector.broadcast %cst_13 : bf16 to vector<128x128xbf16>
    %20 = arith.maximumf %18, %19 : vector<128x128xbf16>
    %21 = vector.shape_cast %20 : vector<128x128xbf16> to vector<8x16x128xbf16>
    %cst_14 = arith.constant dense<0xFF80> : vector<8x128xbf16>
    %22 = vector.multi_reduction <maximumf>, %21, %cst_14 [1] : vector<8x16x128xbf16> to vector<8x128xbf16>
    %23 = arith.extf %22 : vector<8x128xbf16> to vector<8x128xf32>
    %c0_15 = arith.constant 0 : index
    %c0_16 = arith.constant 0 : index
    %24 = vector.load %arg8[%c0_15, %c0_16] : memref<8x128xf32, #tpu.memory_space<vmem>>, vector<8x128xf32>
    %25 = arith.maximumf %24, %23 : vector<8x128xf32>
    %c0_17 = arith.constant 0 : index
    %c0_18 = arith.constant 0 : index
    %26 = vector.load %arg8[%c0_17, %c0_18] : memref<8x128xf32, #tpu.memory_space<vmem>>, vector<8x128xf32>
    tpu.vector_store %arg8[%c0_17, %c0_18], %25 {strides = array<i32>} : memref<8x128xf32, #tpu.memory_space<vmem>>, vector<8x128xf32>,
    %c0_i32_19 = arith.constant 0 : i32
    %27 = arith.cmpi eq, %arg1, %c0_i32_19 : i32
    %28 = arith.extui %27 : i1 to i32
    %c0_i32_20 = arith.constant 0 : i32
    %29 = arith.cmpi ne, %28, %c0_i32_20 : i32
    scf.if %29 {
      %c0_21 = arith.constant 0 : index
      %c0_22 = arith.constant 0 : index
      %30 = vector.load %arg8[%c0_21, %c0_22] : memref<8x128xf32, #tpu.memory_space<vmem>>, vector<8x128xf32>
      %c0_23 = arith.constant 0 : index
      %c0_24 = arith.constant 0 : index
      %31 = vector.load %arg7[%c0_23, %c0_24] : memref<8x128xf32, #tpu.memory_space<vmem>>, vector<8x128xf32>
      tpu.vector_store %arg7[%c0_23, %c0_24], %30 {strides = array<i32>} : memref<8x128xf32, #tpu.memory_space<vmem>>, vector<8x128xf32>,
    } else {
    }
    return
  }
  func.func @transform_0(%arg0: i32, %arg1: i32) -> (i32, i32, i32) {
    %c0_i32 = arith.constant 0 : i32
    %c0_i32_0 = arith.constant 0 : i32
    return %arg0, %arg1, %c0_i32 : i32, i32, i32
  }
  func.func @transform_1(%arg0: i32, %arg1: i32) -> (i32, i32) {
    %c0_i32 = arith.constant 0 : i32
    %c0_i32_0 = arith.constant 0 : i32
    %c0_i32_1 = arith.constant 0 : i32
    return %c0_i32, %c0_i32_0 : i32, i32
  }
  func.func @transform_2(%arg0: i32, %arg1: i32) -> (i32, i32) {
    %c0_i32 = arith.constant 0 : i32
    %c0_i32_0 = arith.constant 0 : i32
    %c0_i32_1 = arith.constant 0 : i32
    return %c0_i32, %c0_i32_0 : i32, i32
  }
  func.func @transform_3(%arg0: i32, %arg1: i32) -> (i32, i32) {
    %c0_i32 = arith.constant 0 : i32
    %c0_i32_0 = arith.constant 0 : i32
    %c0_i32_1 = arith.constant 0 : i32
    return %c0_i32, %c0_i32_0 : i32, i32
  }
  func.func @transform_4(%arg0: i32, %arg1: i32) -> (i32, i32) {
    %c0_i32 = arith.constant 0 : i32
    %c0_i32_0 = arith.constant 0 : i32
    %c0_i32_1 = arith.constant 0 : i32
    return %c0_i32, %c0_i32_0 : i32, i32
  }
  func.func @transform_5(%arg0: i32, %arg1: i32) -> (i32, i32) {
    %c0_i32 = arith.constant 0 : i32
    %c0_i32_0 = arith.constant 0 : i32
    return %arg0, %c0_i32 : i32, i32
  }
}

</mosaic_0001>

<llo_original>
// kernel: tpu_custom_call.1
$region0: #{tpu_custom_call.1}
  #allocation0 [shape = 'u32[]', space=smem, size = 0x4, offset = 0x4, fixed_abs, tag = 'smem constant byte address 0x4 - core index']
  #allocation1 [shape = 'u32[72,128]{1,0:T(1,128)}', space=vmem, size = 0x9000, scoped, tag = 'internal scratch']
  #allocation2 [shape = 'f32[8,128]{1,0:T(8,128)}', space=vmem, size = 0x1000, scoped, tag = 'scratch operand']
  %s0 = inlined_call_operand.vmem [shape: bf16[16,16,7], index: 0, kind: input, shape index: {}]
  %s1 = inlined_call_operand.vmem [shape: bf16[7,128], index: 1, kind: input, shape index: {}]
  %s2 = inlined_call_operand.vmem [shape: bf16[128,128], index: 2, kind: input, shape index: {}]
  %s3 = inlined_call_operand.vmem [shape: bf16[1,128], index: 3, kind: input, shape index: {}]
  %s4 = inlined_call_operand.vmem [shape: bf16[1,128], index: 4, kind: input, shape index: {}]
  %s5 = inlined_call_operand.hbm [shape: f32[16,128], index: 5, kind: output, shape index: {}]
  %s6 = sld [smem:[#allocation0]]
  $region61: #{tpu_custom_call.1} parent=0
    _
  %s8 = ssub.s32 1, %s6
  %s9 = scalar_select 0, %s8, %s6
  $region1: #{tpu_custom_call.1} parent=0
    #allocation3 [shape = 'u8[8192]{0}', space=vmem, size = 0x2000, scoped, tag = 'output window, operand 0']
    #allocation4 [shape = 's32[2]{0}', space=sflag, size = 0x8, scoped, tag = 'scoped memory for tpu_custom_call.1']
    %10 = vsyncpa [#allocation4], 0
    %s11 = scalar_lea.sflag [#allocation4], 1
    %12 = vsyncpa %s11, 0
    loop: start=0, step=1, limit=4
    $region2: #{tpu_custom_call.1} parent=1 // loop_pre_header
      _
    $region3: #{tpu_custom_call.1} parent=1 // loop_header
      %s14 = sphi 0, %s18
      %p15 = scmp.ge.s32.totalorder %s14, 4
      %s21 = sphi 0, %s33
      %s22 = sphi 0, %s29
      %s23 = sphi 0, %s21
      %s24 = sphi 0, %s22
      %s25 = sphi 0, %s23
      %s26 = sphi 0, %s24
      %s38 = sphi 0, %s40
      %s41 = sphi 0, %s38
      %s42 = sphi 0, %s41
      %s58 = sphi 0, %s42
      %s62 = sphi 0, %s62
      %s64 = sphi 0, %s62
      %s65 = sphi 0, %s64
      %s79 = sphi 0, %s65
      %s83 = sphi 0, %s83
      %s85 = sphi 0, %s83
      %s86 = sphi 0, %s85
      %s100 = sphi 0, %s86
      %s104 = sphi 0, %s104
      %s106 = sphi 0, %s104
      %s107 = sphi 0, %s106
      %s121 = sphi 0, %s107
      %s125 = sphi 0, %s125
      %s127 = sphi 0, %s125
      %s128 = sphi 0, %s127
      %s142 = sphi 0, %s128
      %s148 = sphi 0, %s150
      %s151 = sphi 0, %s148
      %s152 = sphi 0, %s151
      %s168 = sphi 0, %s152
    $region4: #{tpu_custom_call.1} parent=1 // loop_header_branch
      %17 = sbr.rel (%p15) target = $region8
    $region5: #{tpu_custom_call.1} parent=1 // loop_body
      %s19 = ssub.s32 %s14, 1
      %s20 = ssub.s32 %s14, 2
      %s27 = sadd.s32 1, %s22
      %p28 = scmp.ge.s32.totalorder %s27, 1
      %s29 = scalar_select %p28, 0, %s27
      %s30 = sadd.s32 1, %s21
      %s31 = scalar_select %p28, %s30, %s21
      %p32 = scmp.ge.s32.totalorder %s31, 2
      %s33 = scalar_select %p32, 0, %s31
      %s34 = ssub.s32 %s21, %s33
      %s35 = ssub.s32 %s22, %s29
      %s36 = sor.u32 %s34, %s35
      %p37 = scmp.eq.s32.totalorder %s36, 0
      %s39 = sadd.s32 %s38, 1
      %s40 = scalar_select %p37, %s38, %s39
      %p43 = pneg %p37
      %p44 = scmp.eq.s32.totalorder %s14, 1
      %p45 = por %p43, %p44
      %p46 = scmp.ne.s32.totalorder %s38, %s41
      %p47 = scmp.eq.s32.totalorder %s14, 0
      %p48 = por %p46, %p47
      %p49 = scmp.ne.s32.totalorder %s38, %s41
      %p50 = scmp.eq.s32.totalorder %s19, 1
      %p51 = por %p49, %p50
      %p52 = scmp.ne.s32.totalorder %s41, %s42
      %p53 = scmp.eq.s32.totalorder %s19, 0
      %p54 = por %p52, %p53
      %p55 = scmp.ne.s32.totalorder %s41, %s42
      %p56 = scmp.eq.s32.totalorder %s20, 1
      %p57 = por %p55, %p56
      %p59 = scmp.ne.s32.totalorder %s42, %s58
      %p60 = scmp.eq.s32.totalorder %s20, 0
      %p61 = por %p59, %p60
      %s63 = sadd.s32 %s62, 1
      %p66 = scmp.eq.s32.totalorder %s14, 1
      %p67 = scmp.ne.s32.totalorder %s62, %s64
      %p68 = scmp.eq.s32.totalorder %s14, 0
      %p69 = por %p67, %p68
      %p70 = scmp.ne.s32.totalorder %s62, %s64
      %p71 = scmp.eq.s32.totalorder %s19, 1
      %p72 = por %p70, %p71
      %p73 = scmp.ne.s32.totalorder %s64, %s65
      %p74 = scmp.eq.s32.totalorder %s19, 0
      %p75 = por %p73, %p74
      %p76 = scmp.ne.s32.totalorder %s64, %s65
      %p77 = scmp.eq.s32.totalorder %s20, 1
      %p78 = por %p76, %p77
      %p80 = scmp.ne.s32.totalorder %s65, %s79
      %p81 = scmp.eq.s32.totalorder %s20, 0
      %p82 = por %p80, %p81
      %s84 = sadd.s32 %s83, 1
      %p87 = scmp.eq.s32.totalorder %s14, 1
      %p88 = scmp.ne.s32.totalorder %s83, %s85
      %p89 = scmp.eq.s32.totalorder %s14, 0
      %p90 = por %p88, %p89
      %p91 = scmp.ne.s32.totalorder %s83, %s85
      %p92 = scmp.eq.s32.totalorder %s19, 1
      %p93 = por %p91, %p92
      %p94 = scmp.ne.s32.totalorder %s85, %s86
      %p95 = scmp.eq.s32.totalorder %s19, 0
      %p96 = por %p94, %p95
      %p97 = scmp.ne.s32.totalorder %s85, %s86
      %p98 = scmp.eq.s32.totalorder %s20, 1
      %p99 = por %p97, %p98
      %p101 = scmp.ne.s32.totalorder %s86, %s100
      %p102 = scmp.eq.s32.totalorder %s20, 0
      %p103 = por %p101, %p102
      %s105 = sadd.s32 %s104, 1
      %p108 = scmp.eq.s32.totalorder %s14, 1
      %p109 = scmp.ne.s32.totalorder %s104, %s106
      %p110 = scmp.eq.s32.totalorder %s14, 0
      %p111 = por %p109, %p110
      %p112 = scmp.ne.s32.totalorder %s104, %s106
      %p113 = scmp.eq.s32.totalorder %s19, 1
      %p114 = por %p112, %p113
      %p115 = scmp.ne.s32.totalorder %s106, %s107
      %p116 = scmp.eq.s32.totalorder %s19, 0
      %p117 = por %p115, %p116
      %p118 = scmp.ne.s32.totalorder %s106, %s107
      %p119 = scmp.eq.s32.totalorder %s20, 1
      %p120 = por %p118, %p119
      %p122 = scmp.ne.s32.totalorder %s107, %s121
      %p123 = scmp.eq.s32.totalorder %s20, 0
      %p124 = por %p122, %p123
      %s126 = sadd.s32 %s125, 1
      %p129 = scmp.eq.s32.totalorder %s14, 1
      %p130 = scmp.ne.s32.totalorder %s125, %s127
      %p131 = scmp.eq.s32.totalorder %s14, 0
      %p132 = por %p130, %p131
      %p133 = scmp.ne.s32.totalorder %s125, %s127
      %p134 = scmp.eq.s32.totalorder %s19, 1
      %p135 = por %p133, %p134
      %p136 = scmp.ne.s32.totalorder %s127, %s128
      %p137 = scmp.eq.s32.totalorder %s19, 0
      %p138 = por %p136, %p137
      %p139 = scmp.ne.s32.totalorder %s127, %s128
      %p140 = scmp.eq.s32.totalorder %s20, 1
      %p141 = por %p139, %p140
      %p143 = scmp.ne.s32.totalorder %s128, %s142
      %p144 = scmp.eq.s32.totalorder %s20, 0
      %p145 = por %p143, %p144
      %s146 = ssub.s32 %s21, %s33
      %p147 = scmp.eq.s32.totalorder %s146, 0
      %s149 = sadd.s32 %s148, 1
      %s150 = scalar_select %p147, %s148, %s149
      %p153 = pneg %p147
      %p154 = scmp.eq.s32.totalorder %s14, 1
      %p155 = por %p153, %p154
      %p156 = scmp.ne.s32.totalorder %s148, %s151
      %p157 = scmp.eq.s32.totalorder %s14, 0
      %p158 = por %p156, %p157
      %p159 = scmp.ne.s32.totalorder %s148, %s151
      %p160 = scmp.eq.s32.totalorder %s19, 1
      %p161 = por %p159, %p160
      %p162 = scmp.ne.s32.totalorder %s151, %s152
      %p163 = scmp.eq.s32.totalorder %s19, 0
      %p164 = por %p162, %p163
      %p165 = scmp.ne.s32.totalorder %s151, %s152
      %p166 = scmp.eq.s32.totalorder %s20, 1
      %p167 = por %p165, %p166
      %p169 = scmp.ne.s32.totalorder %s152, %s168
      %p170 = scmp.eq.s32.totalorder %s20, 0
      %p171 = por %p169, %p170
      %p172 = scmp.le.s32.totalorder 1, %s14
      %p173 = scmp.lt.s32.totalorder %s14, 3
      %p174 = pnand %p172, %p173
      %p175 = pneg %p174
      // Predicated region
      $region9: #{tpu_custom_call.1} parent=5 // pred_check
        _
      $region10: #{tpu_custom_call.1} parent=5 // pred_check_branch
        %177 = sbr.rel (%p174) target = $region12
      $region11: #{tpu_custom_call.1} parent=5 // pred_region
        %s178 = ssub.s32 %s14, 1
        // Predicated region
        $region13: #{tpu_custom_call.1} parent=11 // pred_check
          %p179 = pneg %p75
        $region14: #{tpu_custom_call.1} parent=11 // pred_check_branch
          %181 = sbr.rel (%p179) target = $region16
        $region15: #{tpu_custom_call.1} parent=11 // pred_region
          _
        $region16: #{tpu_custom_call.1} parent=11 // pred_fallthru
          _
        // Predicated region
        $region17: #{tpu_custom_call.1} parent=11 // pred_check
          %p182 = pneg %p96
        $region18: #{tpu_custom_call.1} parent=11 // pred_check_branch
          %184 = sbr.rel (%p182) target = $region20
        $region19: #{tpu_custom_call.1} parent=11 // pred_region
          _
        $region20: #{tpu_custom_call.1} parent=11 // pred_fallthru
          _
        // Predicated region
        $region21: #{tpu_custom_call.1} parent=11 // pred_check
          %p185 = pneg %p117
        $region22: #{tpu_custom_call.1} parent=11 // pred_check_branch
          %187 = sbr.rel (%p185) target = $region24
        $region23: #{tpu_custom_call.1} parent=11 // pred_region
          _
        $region24: #{tpu_custom_call.1} parent=11 // pred_fallthru
          _
        // Predicated region
        $region25: #{tpu_custom_call.1} parent=11 // pred_check
          %p188 = pneg %p138
        $region26: #{tpu_custom_call.1} parent=11 // pred_check_branch
          %190 = sbr.rel (%p188) target = $region28
        $region27: #{tpu_custom_call.1} parent=11 // pred_region
          _
        $region28: #{tpu_custom_call.1} parent=11 // pred_fallthru
          _
      $region12: #{tpu_custom_call.1} parent=5 // pred_fallthru
        _
      %p191 = scmp.lt.s32.totalorder %s14, 2
      // Predicated region
      $region29: #{tpu_custom_call.1} parent=5 // pred_check
        %p192 = pneg %p191
      $region30: #{tpu_custom_call.1} parent=5 // pred_check_branch
        %194 = sbr.rel (%p192) target = $region32
      $region31: #{tpu_custom_call.1} parent=5 // pred_region
        // Predicated region
        $region33: #{tpu_custom_call.1} parent=31 // pred_check
          %p195 = pneg %p48
        $region34: #{tpu_custom_call.1} parent=31 // pred_check_branch
          %197 = sbr.rel (%p195) target = $region36
        $region35: #{tpu_custom_call.1} parent=31 // pred_region
          %s198 = smul.u32 8, %s21
          %s199 = smul.u32 2, %s22
          %p200 = scmp.lt.s32.totalorder %s198, 15
          %s201 = scalar_select %p200, %s198, 15
          %p202 = scmp.lt.s32.totalorder %s199, 1
          %s203 = scalar_select %p202, %s199, 1
          %s204 = smul.addr %s201, 2
          %s205 = sadd.s32 %s203, %s204
          %s206 = smul.addr %s205, 4
          %s207 = scalar_lea.vmem %s0, %s206
          %s208 = smul.u32 8, %s21
          %s209 = smul.u32 2, %s22
        $region36: #{tpu_custom_call.1} parent=31 // pred_fallthru
          _
      $region32: #{tpu_custom_call.1} parent=5 // pred_fallthru
        _
      %p210 = scmp.le.s32.totalorder 1, %s14
      %p211 = scmp.lt.s32.totalorder %s14, 3
      %p212 = pnand %p210, %p211
      %p213 = pneg %p212
      // Predicated region
      $region37: #{tpu_custom_call.1} parent=5 // pred_check
        _
      $region38: #{tpu_custom_call.1} parent=5 // pred_check_branch
        %215 = sbr.rel (%p212) target = $region40
      $region39: #{tpu_custom_call.1} parent=5 // pred_region
        %s216 = ssub.s32 %s14, 1
        %s217 = smul.u32 8, %s23
        %s218 = smul.u32 2, %s24
        %p219 = scmp.lt.s32.totalorder %s217, 15
        %s220 = scalar_select %p219, %s217, 15
        %p221 = scmp.lt.s32.totalorder %s218, 1
        %s222 = scalar_select %p221, %s218, 1
        %s223 = smul.addr %s220, 2
        %s224 = sadd.s32 %s222, %s223
        %s225 = smul.addr %s224, 4
        %s226 = scalar_lea.vmem %s0, %s225
        %p227 = pneg %p54
        %p228 = pneg %p51
        %p229 = pneg %p75
        %p230 = pneg %p72
        %p231 = pneg %p96
        %p232 = pneg %p93
        %p233 = pneg %p117
        %p234 = pneg %p114
        %p235 = pneg %p138
        %p236 = pneg %p135
        %p237 = pneg %p164
        %p238 = pneg %p161
        %s239 = sand.u32 %s151, 1
        %s240 = scalar_lea.sflag [#allocation4], %s239
        %s241 = sand.u32 %s151, 1
        %s242 = smul.addr %s241, 8
        %s243 = scalar_lea.vmem [#allocation3], %s242
        %s244 = smul.u32 8, %s23
        %s245 = smul.u32 2, %s24
        %p246 = scmp.lt.s32.totalorder %s244, 15
        %s247 = scalar_select %p246, %s244, 15
        %p248 = scmp.lt.s32.totalorder %s245, 1
        %s249 = scalar_select %p248, %s245, 1
        %s250 = smul.addr %s247, 2
        %s251 = sadd.s32 %s249, %s250
        %s252 = smul.addr %s251, 4
        %s253 = scalar_lea.vmem %s0, %s252
        %s254 = smul.u32 8, %s23
        %s255 = smul.u32 2, %s24
        %p257 = scmp.eq.s32.totalorder %s24, 0
        // Predicated region
        $region41: #{tpu_custom_call.1} parent=39 // pred_check
          %p258 = pneg %p257
        $region42: #{tpu_custom_call.1} parent=39 // pred_check_branch
          %260 = sbr.rel (%p258) target = $region44
        $region43: #{tpu_custom_call.1} parent=39 // pred_region
          %261 = vst [vmem:[#allocation2] sm:$0xff] -inf
        $region44: #{tpu_custom_call.1} parent=39 // pred_fallthru
          _
        %v262 = vld [vmem:[%s1] sm:$0xf]
        %v263 = vld [vmem:[%s2] sm:$0xf]
        %v264 = vld [vmem:[%s2 + $0x4] sm:$0xf]
        %v265 = vld [vmem:[%s2 + $0x8] sm:$0xf]
        %v266 = vld [vmem:[%s2 + $0xc] sm:$0xf]
        %v267 = vld [vmem:[%s2 + $0x10] sm:$0xf]
        %v268 = vld [vmem:[%s2 + $0x14] sm:$0xf]
        %v269 = vld [vmem:[%s2 + $0x18] sm:$0xf]
        %v270 = vld [vmem:[%s2 + $0x1c] sm:$0xf]
        %v271 = vld [vmem:[%s2 + $0x20] sm:$0xf]
        %v272 = vld [vmem:[%s2 + $0x24] sm:$0xf]
        %v273 = vld [vmem:[%s2 + $0x28] sm:$0xf]
        %v274 = vld [vmem:[%s2 + $0x2c] sm:$0xf]
        %v275 = vld [vmem:[%s2 + $0x30] sm:$0xf]
        %v276 = vld [vmem:[%s2 + $0x34] sm:$0xf]
        %v277 = vld [vmem:[%s2 + $0x38] sm:$0xf]
        %v278 = vld [vmem:[%s2 + $0x3c] sm:$0xf]
        %v279 = vld [vmem:[%s3] sm:$0x1]
        %v280 = vld [vmem:[%s4] sm:$0x1]
        %v281 = vld [vmem:[%s253] sm:$0xf]
        %v282 = vld [vmem:[%s253 + $0x4] sm:$0xf]
        %v283 = vld [vmem:[%s253 + $0x8] sm:$0xf]
        %v284 = vld [vmem:[%s253 + $0xc] sm:$0xf]
        %v285 = vld [vmem:[%s253 + $0x10] sm:$0xf]
        %v286 = vld [vmem:[%s253 + $0x14] sm:$0xf]
        %v287 = vld [vmem:[%s253 + $0x18] sm:$0xf]
        %v288 = vld [vmem:[%s253 + $0x1c] sm:$0xf]
        %v289 = vld [vmem:[%s253 + $0x20] sm:$0xf]
        %v290 = vld [vmem:[%s253 + $0x24] sm:$0xf]
        %v291 = vld [vmem:[%s253 + $0x28] sm:$0xf]
        %v292 = vld [vmem:[%s253 + $0x2c] sm:$0xf]
        %v293 = vld [vmem:[%s253 + $0x30] sm:$0xf]
        %v294 = vld [vmem:[%s253 + $0x34] sm:$0xf]
        %v295 = vld [vmem:[%s253 + $0x38] sm:$0xf]
        %v296 = vld [vmem:[%s253 + $0x3c] sm:$0xf]
        %v313 = vunpack.c.l.b16 %v281
        %v314 = vunpack.c.l.b16 %v282
        %v315 = vunpack.c.l.b16 %v283
        %v316 = vunpack.c.l.b16 %v284
        %v317 = vunpack.c.l.b16 %v285
        %v318 = vunpack.c.l.b16 %v286
        %v319 = vunpack.c.l.b16 %v287
        %v320 = vunpack.c.l.b16 %v288
        %v321 = vunpack.c.l.b16 %v289
        %v322 = vunpack.c.l.b16 %v290
        %v323 = vunpack.c.l.b16 %v291
        %v324 = vunpack.c.l.b16 %v292
        %v325 = vunpack.c.l.b16 %v293
        %v326 = vunpack.c.l.b16 %v294
        %v327 = vunpack.c.l.b16 %v295
        %v328 = vunpack.c.l.b16 %v296
        %v329 = vpack.c.b16 %v314, %v313
        %v330 = vpack.c.b16 %v316, %v315
        %v331 = vpack.c.b16 %v318, %v317
        %v332 = vpack.c.b16 %v320, %v319
        %v333 = vpack.c.b16 %v322, %v321
        %v334 = vpack.c.b16 %v324, %v323
        %v335 = vpack.c.b16 %v326, %v325
        %v336 = vpack.c.b16 %v328, %v327
        %vm337 = vcmask 56320
        %v339 = vsel %vm337, %v329, 0
        %v342 = vsel %vm337, %v330, 0
        %v345 = vsel %vm337, %v331, 0
        %v348 = vsel %vm337, %v332, 0
        %v351 = vsel %vm337, %v333, 0
        %v354 = vsel %vm337, %v334, 0
        %v357 = vsel %vm337, %v335, 0
        %v360 = vsel %vm337, %v336, 0
        %vm362 = vcmask 1042432
        %vm363 = vcmask 1043456
        %v364 = vsel %vm362, 4294967295, 65535
        %v365 = vsel %vm363, %v364, 0
        %v367 = vand.u32 %v262, %v365
        %369 = vmatpush.bf16.msra.mxu0 0
        %370 = vmatpush.bf16.msra.mxu0 0
        %371 = vmatpush.bf16.msra.mxu0 0
        %372 = vmatpush.bf16.msra.mxu0 0
        %373 = vmatpush.bf16.msra.mxu0 0
        %374 = vmatpush.bf16.msra.mxu0 0
        %375 = vmatpush.bf16.msra.mxu0 0
        %376 = vmatpush.bf16.msra.mxu0 %v367
        %377 = vmatmul.bf16.gmra.mxu0 %v339
        %v378 = vpop.f32.mrf.mxu0
        %v379 = vadd.f32 0.0, %v378
        %v380 = vpop.f32.mrf.mxu0
        %v381 = vadd.f32 0.0, %v380
        %382 = vmatmul.bf16.gmra.mxu0 %v342
        %v383 = vpop.f32.mrf.mxu0
        %v384 = vadd.f32 0.0, %v383
        %v385 = vpop.f32.mrf.mxu0
        %v386 = vadd.f32 0.0, %v385
        %387 = vmatmul.bf16.gmra.mxu0 %v345
        %v388 = vpop.f32.mrf.mxu0
        %v389 = vadd.f32 0.0, %v388
        %v390 = vpop.f32.mrf.mxu0
        %v391 = vadd.f32 0.0, %v390
        %392 = vmatmul.bf16.gmra.mxu0 %v348
        %v393 = vpop.f32.mrf.mxu0
        %v394 = vadd.f32 0.0, %v393
        %v395 = vpop.f32.mrf.mxu0
        %v396 = vadd.f32 0.0, %v395
        %397 = vmatmul.bf16.gmra.mxu0 %v351
        %v398 = vpop.f32.mrf.mxu0
        %v399 = vadd.f32 0.0, %v398
        %v400 = vpop.f32.mrf.mxu0
        %v401 = vadd.f32 0.0, %v400
        %402 = vmatmul.bf16.gmra.mxu0 %v354
        %v403 = vpop.f32.mrf.mxu0
        %v404 = vadd.f32 0.0, %v403
        %v405 = vpop.f32.mrf.mxu0
        %v406 = vadd.f32 0.0, %v405
        %407 = vmatmul.bf16.gmra.mxu0 %v357
        %v408 = vpop.f32.mrf.mxu0
        %v409 = vadd.f32 0.0, %v408
        %v410 = vpop.f32.mrf.mxu0
        %v411 = vadd.f32 0.0, %v410
        %412 = vmatmul.bf16.gmra.mxu0 %v360
        %v413 = vpop.f32.mrf.mxu0
        %v414 = vadd.f32 0.0, %v413
        %v415 = vpop.f32.mrf.mxu0
        %v416 = vadd.f32 0.0, %v415
        %417 = vdwg.mxu0
        %v418 = vpack.c.bf16 %v379, %v379
        %v419 = vpack.c.bf16 %v381, %v381
        %v420 = vpack.c.bf16 %v384, %v384
        %v421 = vpack.c.bf16 %v386, %v386
        %v422 = vpack.c.bf16 %v389, %v389
        %v423 = vpack.c.bf16 %v391, %v391
        %v424 = vpack.c.bf16 %v394, %v394
        %v425 = vpack.c.bf16 %v396, %v396
        %v426 = vpack.c.bf16 %v399, %v399
        %v427 = vpack.c.bf16 %v401, %v401
        %v428 = vpack.c.bf16 %v404, %v404
        %v429 = vpack.c.bf16 %v406, %v406
        %v430 = vpack.c.bf16 %v409, %v409
        %v431 = vpack.c.bf16 %v411, %v411
        %v432 = vpack.c.bf16 %v414, %v414
        %v433 = vpack.c.bf16 %v416, %v416
        %v435 = vpack.i.b16 %v279, %v279
        %v437 = vperm.slane %v435, 0
        %v438 = vunpack.c.l.bf16 %v418
        %v439 = vunpack.c.l.bf16 %v419
        %v440 = vunpack.c.l.bf16 %v420
        %v441 = vunpack.c.l.bf16 %v421
        %v442 = vunpack.c.l.bf16 %v422
        %v443 = vunpack.c.l.bf16 %v423
        %v444 = vunpack.c.l.bf16 %v424
        %v445 = vunpack.c.l.bf16 %v425
        %v446 = vunpack.c.l.bf16 %v426
        %v447 = vunpack.c.l.bf16 %v427
        %v448 = vunpack.c.l.bf16 %v428
        %v449 = vunpack.c.l.bf16 %v429
        %v450 = vunpack.c.l.bf16 %v430
        %v451 = vunpack.c.l.bf16 %v431
        %v452 = vunpack.c.l.bf16 %v432
        %v453 = vunpack.c.l.bf16 %v433
        %v454 = vunpack.c.l.bf16 %v437
        %v455 = vadd.f32 %v438, %v454
        %v456 = vadd.f32 %v439, %v454
        %v457 = vadd.f32 %v440, %v454
        %v458 = vadd.f32 %v441, %v454
        %v459 = vadd.f32 %v442, %v454
        %v460 = vadd.f32 %v443, %v454
        %v461 = vadd.f32 %v444, %v454
        %v462 = vadd.f32 %v445, %v454
        %v463 = vadd.f32 %v446, %v454
        %v464 = vadd.f32 %v447, %v454
        %v465 = vadd.f32 %v448, %v454
        %v466 = vadd.f32 %v449, %v454
        %v467 = vadd.f32 %v450, %v454
        %v468 = vadd.f32 %v451, %v454
        %v469 = vadd.f32 %v452, %v454
        %v470 = vadd.f32 %v453, %v454
        %v471 = vpack.c.bf16 %v455, %v455
        %v472 = vpack.c.bf16 %v456, %v456
        %v473 = vpack.c.bf16 %v457, %v457
        %v474 = vpack.c.bf16 %v458, %v458
        %v475 = vpack.c.bf16 %v459, %v459
        %v476 = vpack.c.bf16 %v460, %v460
        %v477 = vpack.c.bf16 %v461, %v461
        %v478 = vpack.c.bf16 %v462, %v462
        %v479 = vpack.c.bf16 %v463, %v463
        %v480 = vpack.c.bf16 %v464, %v464
        %v481 = vpack.c.bf16 %v465, %v465
        %v482 = vpack.c.bf16 %v466, %v466
        %v483 = vpack.c.bf16 %v467, %v467
        %v484 = vpack.c.bf16 %v468, %v468
        %v485 = vpack.c.bf16 %v469, %v469
        %v486 = vpack.c.bf16 %v470, %v470
        %v487 = vunpack.c.l.bf16 %v471
        %v488 = vunpack.c.l.bf16 %v472
        %v489 = vunpack.c.l.bf16 %v473
        %v490 = vunpack.c.l.bf16 %v474
        %v491 = vunpack.c.l.bf16 %v475
        %v492 = vunpack.c.l.bf16 %v476
        %v493 = vunpack.c.l.bf16 %v477
        %v494 = vunpack.c.l.bf16 %v478
        %v495 = vunpack.c.l.bf16 %v479
        %v496 = vunpack.c.l.bf16 %v480
        %v497 = vunpack.c.l.bf16 %v481
        %v498 = vunpack.c.l.bf16 %v482
        %v499 = vunpack.c.l.bf16 %v483
        %v500 = vunpack.c.l.bf16 %v484
        %v501 = vunpack.c.l.bf16 %v485
        %v502 = vunpack.c.l.bf16 %v486
        %v503 = vmax.f32 %v487, 0.0
        %v504 = vmax.f32 %v488, 0.0
        %v505 = vmax.f32 %v489, 0.0
        %v506 = vmax.f32 %v490, 0.0
        %v507 = vmax.f32 %v491, 0.0
        %v508 = vmax.f32 %v492, 0.0
        %v509 = vmax.f32 %v493, 0.0
        %v510 = vmax.f32 %v494, 0.0
        %v511 = vmax.f32 %v495, 0.0
        %v512 = vmax.f32 %v496, 0.0
        %v513 = vmax.f32 %v497, 0.0
        %v514 = vmax.f32 %v498, 0.0
        %v515 = vmax.f32 %v499, 0.0
        %v516 = vmax.f32 %v500, 0.0
        %v517 = vmax.f32 %v501, 0.0
        %v518 = vmax.f32 %v502, 0.0
        %v519 = vpack.c.bf16 %v504, %v503
        %v520 = vpack.c.bf16 %v506, %v505
        %v521 = vpack.c.bf16 %v508, %v507
        %v522 = vpack.c.bf16 %v510, %v509
        %v523 = vpack.c.bf16 %v512, %v511
        %v524 = vpack.c.bf16 %v514, %v513
        %v525 = vpack.c.bf16 %v516, %v515
        %v526 = vpack.c.bf16 %v518, %v517
        %v543 = vunpack.c.l.b16 %v263
        %v544 = vunpack.c.l.b16 %v264
        %v545 = vunpack.c.l.b16 %v265
        %v546 = vunpack.c.l.b16 %v266
        %v547 = vunpack.c.l.b16 %v267
        %v548 = vunpack.c.l.b16 %v268
        %v549 = vunpack.c.l.b16 %v269
        %v550 = vunpack.c.l.b16 %v270
        %v551 = vunpack.c.l.b16 %v271
        %v552 = vunpack.c.l.b16 %v272
        %v553 = vunpack.c.l.b16 %v273
        %v554 = vunpack.c.l.b16 %v274
        %v555 = vunpack.c.l.b16 %v275
        %v556 = vunpack.c.l.b16 %v276
        %v557 = vunpack.c.l.b16 %v277
        %v558 = vunpack.c.l.b16 %v278
        %v559 = vpack.c.b16 %v544, %v543
        %v560 = vpack.c.b16 %v546, %v545
        %v561 = vpack.c.b16 %v548, %v547
        %v562 = vpack.c.b16 %v550, %v549
        %v563 = vpack.c.b16 %v552, %v551
        %v564 = vpack.c.b16 %v554, %v553
        %v565 = vpack.c.b16 %v556, %v555
        %v566 = vpack.c.b16 %v558, %v557
        %575 = vmatpush.bf16.msra.mxu0 %v566
        %576 = vmatpush.bf16.msra.mxu0 %v565
        %577 = vmatpush.bf16.msra.mxu0 %v564
        %578 = vmatpush.bf16.msra.mxu0 %v563
        %579 = vmatpush.bf16.msra.mxu0 %v562
        %580 = vmatpush.bf16.msra.mxu0 %v561
        %581 = vmatpush.bf16.msra.mxu0 %v560
        %582 = vmatpush.bf16.msra.mxu0 %v559
        %583 = vmatmul.bf16.gmra.mxu0 %v519
        %v584 = vpop.f32.mrf.mxu0
        %v585 = vadd.f32 0.0, %v584
        %v586 = vpop.f32.mrf.mxu0
        %v587 = vadd.f32 0.0, %v586
        %588 = vmatmul.bf16.gmra.mxu0 %v520
        %v589 = vpop.f32.mrf.mxu0
        %v590 = vadd.f32 0.0, %v589
        %v591 = vpop.f32.mrf.mxu0
        %v592 = vadd.f32 0.0, %v591
        %593 = vmatmul.bf16.gmra.mxu0 %v521
        %v594 = vpop.f32.mrf.mxu0
        %v595 = vadd.f32 0.0, %v594
        %v596 = vpop.f32.mrf.mxu0
        %v597 = vadd.f32 0.0, %v596
        %598 = vmatmul.bf16.gmra.mxu0 %v522
        %v599 = vpop.f32.mrf.mxu0
        %v600 = vadd.f32 0.0, %v599
        %v601 = vpop.f32.mrf.mxu0
        %v602 = vadd.f32 0.0, %v601
        %603 = vmatmul.bf16.gmra.mxu0 %v523
        %v604 = vpop.f32.mrf.mxu0
        %v605 = vadd.f32 0.0, %v604
        %v606 = vpop.f32.mrf.mxu0
        %v607 = vadd.f32 0.0, %v606
        %608 = vmatmul.bf16.gmra.mxu0 %v524
        %v609 = vpop.f32.mrf.mxu0
        %v610 = vadd.f32 0.0, %v609
        %v611 = vpop.f32.mrf.mxu0
        %v612 = vadd.f32 0.0, %v611
        %613 = vmatmul.bf16.gmra.mxu0 %v525
        %v614 = vpop.f32.mrf.mxu0
        %v615 = vadd.f32 0.0, %v614
        %v616 = vpop.f32.mrf.mxu0
        %v617 = vadd.f32 0.0, %v616
        %618 = vmatmul.bf16.gmra.mxu0 %v526
        %v619 = vpop.f32.mrf.mxu0
        %v620 = vadd.f32 0.0, %v619
        %v621 = vpop.f32.mrf.mxu0
        %v622 = vadd.f32 0.0, %v621
        %623 = vdwg.mxu0
        %v624 = vpack.c.bf16 %v585, %v585
        %v625 = vpack.c.bf16 %v587, %v587
        %v626 = vpack.c.bf16 %v590, %v590
        %v627 = vpack.c.bf16 %v592, %v592
        %v628 = vpack.c.bf16 %v595, %v595
        %v629 = vpack.c.bf16 %v597, %v597
        %v630 = vpack.c.bf16 %v600, %v600
        %v631 = vpack.c.bf16 %v602, %v602
        %v632 = vpack.c.bf16 %v605, %v605
        %v633 = vpack.c.bf16 %v607, %v607
        %v634 = vpack.c.bf16 %v610, %v610
        %v635 = vpack.c.bf16 %v612, %v612
        %v636 = vpack.c.bf16 %v615, %v615
        %v637 = vpack.c.bf16 %v617, %v617
        %v638 = vpack.c.bf16 %v620, %v620
        %v639 = vpack.c.bf16 %v622, %v622
        %v641 = vpack.i.b16 %v280, %v280
        %v643 = vperm.slane %v641, 0
        %v644 = vunpack.c.l.bf16 %v624
        %v645 = vunpack.c.l.bf16 %v625
        %v646 = vunpack.c.l.bf16 %v626
        %v647 = vunpack.c.l.bf16 %v627
        %v648 = vunpack.c.l.bf16 %v628
        %v649 = vunpack.c.l.bf16 %v629
        %v650 = vunpack.c.l.bf16 %v630
        %v651 = vunpack.c.l.bf16 %v631
        %v652 = vunpack.c.l.bf16 %v632
        %v653 = vunpack.c.l.bf16 %v633
        %v654 = vunpack.c.l.bf16 %v634
        %v655 = vunpack.c.l.bf16 %v635
        %v656 = vunpack.c.l.bf16 %v636
        %v657 = vunpack.c.l.bf16 %v637
        %v658 = vunpack.c.l.bf16 %v638
        %v659 = vunpack.c.l.bf16 %v639
        %v660 = vunpack.c.l.bf16 %v643
        %v661 = vadd.f32 %v644, %v660
        %v662 = vadd.f32 %v645, %v660
        %v663 = vadd.f32 %v646, %v660
        %v664 = vadd.f32 %v647, %v660
        %v665 = vadd.f32 %v648, %v660
        %v666 = vadd.f32 %v649, %v660
        %v667 = vadd.f32 %v650, %v660
        %v668 = vadd.f32 %v651, %v660
        %v669 = vadd.f32 %v652, %v660
        %v670 = vadd.f32 %v653, %v660
        %v671 = vadd.f32 %v654, %v660
        %v672 = vadd.f32 %v655, %v660
        %v673 = vadd.f32 %v656, %v660
        %v674 = vadd.f32 %v657, %v660
        %v675 = vadd.f32 %v658, %v660
        %v676 = vadd.f32 %v659, %v660
        %v677 = vpack.c.bf16 %v661, %v661
        %v678 = vpack.c.bf16 %v662, %v662
        %v679 = vpack.c.bf16 %v663, %v663
        %v680 = vpack.c.bf16 %v664, %v664
        %v681 = vpack.c.bf16 %v665, %v665
        %v682 = vpack.c.bf16 %v666, %v666
        %v683 = vpack.c.bf16 %v667, %v667
        %v684 = vpack.c.bf16 %v668, %v668
        %v685 = vpack.c.bf16 %v669, %v669
        %v686 = vpack.c.bf16 %v670, %v670
        %v687 = vpack.c.bf16 %v671, %v671
        %v688 = vpack.c.bf16 %v672, %v672
        %v689 = vpack.c.bf16 %v673, %v673
        %v690 = vpack.c.bf16 %v674, %v674
        %v691 = vpack.c.bf16 %v675, %v675
        %v692 = vpack.c.bf16 %v676, %v676
        %v693 = vunpack.c.l.bf16 %v677
        %v694 = vunpack.c.l.bf16 %v678
        %v695 = vunpack.c.l.bf16 %v679
        %v696 = vunpack.c.l.bf16 %v680
        %v697 = vunpack.c.l.bf16 %v681
        %v698 = vunpack.c.l.bf16 %v682
        %v699 = vunpack.c.l.bf16 %v683
        %v700 = vunpack.c.l.bf16 %v684
        %v701 = vunpack.c.l.bf16 %v685
        %v702 = vunpack.c.l.bf16 %v686
        %v703 = vunpack.c.l.bf16 %v687
        %v704 = vunpack.c.l.bf16 %v688
        %v705 = vunpack.c.l.bf16 %v689
        %v706 = vunpack.c.l.bf16 %v690
        %v707 = vunpack.c.l.bf16 %v691
        %v708 = vunpack.c.l.bf16 %v692
        %v709 = vmax.f32 %v693, 0.0
        %v710 = vmax.f32 %v694, 0.0
        %v711 = vmax.f32 %v695, 0.0
        %v712 = vmax.f32 %v696, 0.0
        %v713 = vmax.f32 %v697, 0.0
        %v714 = vmax.f32 %v698, 0.0
        %v715 = vmax.f32 %v699, 0.0
        %v716 = vmax.f32 %v700, 0.0
        %v717 = vmax.f32 %v701, 0.0
        %v718 = vmax.f32 %v702, 0.0
        %v719 = vmax.f32 %v703, 0.0
        %v720 = vmax.f32 %v704, 0.0
        %v721 = vmax.f32 %v705, 0.0
        %v722 = vmax.f32 %v706, 0.0
        %v723 = vmax.f32 %v707, 0.0
        %v724 = vmax.f32 %v708, 0.0
        %v725 = vpack.c.bf16 %v709, %v709
        %v726 = vpack.c.bf16 %v710, %v710
        %v727 = vpack.c.bf16 %v711, %v711
        %v728 = vpack.c.bf16 %v712, %v712
        %v729 = vpack.c.bf16 %v713, %v713
        %v730 = vpack.c.bf16 %v714, %v714
        %v731 = vpack.c.bf16 %v715, %v715
        %v732 = vpack.c.bf16 %v716, %v716
        %v733 = vpack.c.bf16 %v717, %v717
        %v734 = vpack.c.bf16 %v718, %v718
        %v735 = vpack.c.bf16 %v719, %v719
        %v736 = vpack.c.bf16 %v720, %v720
        %v737 = vpack.c.bf16 %v721, %v721
        %v738 = vpack.c.bf16 %v722, %v722
        %v739 = vpack.c.bf16 %v723, %v723
        %v740 = vpack.c.bf16 %v724, %v724
        %v741 = vunpack.c.l.bf16 %v725
        %v742 = vunpack.c.l.bf16 %v726
        %v743 = vunpack.c.l.bf16 %v727
        %v744 = vunpack.c.l.bf16 %v728
        %v745 = vunpack.c.l.bf16 %v729
        %v746 = vunpack.c.l.bf16 %v730
        %v747 = vunpack.c.l.bf16 %v731
        %v748 = vunpack.c.l.bf16 %v732
        %v749 = vunpack.c.l.bf16 %v733
        %v750 = vunpack.c.l.bf16 %v734
        %v751 = vunpack.c.l.bf16 %v735
        %v752 = vunpack.c.l.bf16 %v736
        %v753 = vunpack.c.l.bf16 %v737
        %v754 = vunpack.c.l.bf16 %v738
        %v755 = vunpack.c.l.bf16 %v739
        %v756 = vunpack.c.l.bf16 %v740
        %v757 = vmax.f32 %v741, %v742
        %v758 = vrot.slane %v757, 4
        %v759 = vmax.f32 %v757, %v758
        %v760 = vrot.slane %v759, 2
        %v761 = vmax.f32 %v759, %v760
        %v762 = vrot.slane %v761, 1
        %v763 = vmax.f32 %v761, %v762
        %v764 = vmax.f32 %v743, %v744
        %v765 = vrot.slane %v764, 4
        %v766 = vmax.f32 %v764, %v765
        %v767 = vrot.slane %v766, 2
        %v768 = vmax.f32 %v766, %v767
        %v769 = vrot.slane %v768, 1
        %v770 = vmax.f32 %v768, %v769
        %v771 = vmax.f32 %v745, %v746
        %v772 = vrot.slane %v771, 4
        %v773 = vmax.f32 %v771, %v772
        %v774 = vrot.slane %v773, 2
        %v775 = vmax.f32 %v773, %v774
        %v776 = vrot.slane %v775, 1
        %v777 = vmax.f32 %v775, %v776
        %v778 = vmax.f32 %v747, %v748
        %v779 = vrot.slane %v778, 4
        %v780 = vmax.f32 %v778, %v779
        %v781 = vrot.slane %v780, 2
        %v782 = vmax.f32 %v780, %v781
        %v783 = vrot.slane %v782, 1
        %v784 = vmax.f32 %v782, %v783
        %v785 = vmax.f32 %v749, %v750
        %v786 = vrot.slane %v785, 4
        %v787 = vmax.f32 %v785, %v786
        %v788 = vrot.slane %v787, 2
        %v789 = vmax.f32 %v787, %v788
        %v790 = vrot.slane %v789, 1
        %v791 = vmax.f32 %v789, %v790
        %v792 = vmax.f32 %v751, %v752
        %v793 = vrot.slane %v792, 4
        %v794 = vmax.f32 %v792, %v793
        %v795 = vrot.slane %v794, 2
        %v796 = vmax.f32 %v794, %v795
        %v797 = vrot.slane %v796, 1
        %v798 = vmax.f32 %v796, %v797
        %v799 = vmax.f32 %v753, %v754
        %v800 = vrot.slane %v799, 4
        %v801 = vmax.f32 %v799, %v800
        %v802 = vrot.slane %v801, 2
        %v803 = vmax.f32 %v801, %v802
        %v804 = vrot.slane %v803, 1
        %v805 = vmax.f32 %v803, %v804
        %v806 = vmax.f32 %v755, %v756
        %v807 = vrot.slane %v806, 4
        %v808 = vmax.f32 %v806, %v807
        %v809 = vrot.slane %v808, 2
        %v810 = vmax.f32 %v808, %v809
        %v811 = vrot.slane %v810, 1
        %v812 = vmax.f32 %v810, %v811
        %v813 = vpack.c.bf16 %v763, %v763
        %v814 = vpack.c.bf16 %v770, %v770
        %v815 = vpack.c.bf16 %v777, %v777
        %v816 = vpack.c.bf16 %v784, %v784
        %v817 = vpack.c.bf16 %v791, %v791
        %v818 = vpack.c.bf16 %v798, %v798
        %v819 = vpack.c.bf16 %v805, %v805
        %v820 = vpack.c.bf16 %v812, %v812
        %v821 = vunpack.c.l.bf16 %v813
        %v822 = vunpack.c.l.bf16 %v814
        %v823 = vunpack.c.l.bf16 %v815
        %v824 = vunpack.c.l.bf16 %v816
        %v825 = vunpack.c.l.bf16 %v817
        %v826 = vunpack.c.l.bf16 %v818
        %v827 = vunpack.c.l.bf16 %v819
        %v828 = vunpack.c.l.bf16 %v820
        %v829 = vld [vmem:[#allocation2] sm:$0xff]
        %vm838 = vcmask 1041409
        %v839 = vsel %vm838, %v822, %v821
        %vm840 = vcmask 1042434
        %v841 = vsel %vm840, %v823, %v839
        %vm842 = vcmask 1043459
        %v843 = vsel %vm842, %v824, %v841
        %vm844 = vcmask 1044484
        %v845 = vsel %vm844, %v825, %v843
        %vm846 = vcmask 1045509
        %v847 = vsel %vm846, %v826, %v845
        %vm848 = vcmask 1046534
        %v849 = vsel %vm848, %v827, %v847
        %vm850 = vcmask 1047559
        %v851 = vsel %vm850, %v828, %v849
        %v853 = vmax.f32 %v829, %v851
        %854 = vst [vmem:[#allocation2] sm:$0xff] %v853
        // Predicated region
        $region45: #{tpu_custom_call.1} parent=39 // pred_check
          %p855 = pneg %p257
        $region46: #{tpu_custom_call.1} parent=39 // pred_check_branch
          %857 = sbr.rel (%p855) target = $region48
        $region47: #{tpu_custom_call.1} parent=39 // pred_region
          %v858 = vld [vmem:[#allocation2] sm:$0xff]
          %859 = vst [vmem:[%s243] sm:$0xff] %v858
        $region48: #{tpu_custom_call.1} parent=39 // pred_fallthru
          _
        %s860 = sand.u32 %s151, 1
        %s861 = scalar_lea.sflag [#allocation4], %s860
        %s862 = sand.u32 %s151, 1
        %s863 = smul.addr %s862, 8
        %s864 = scalar_lea.vmem [#allocation3], %s863
        // Predicated region
        $region49: #{tpu_custom_call.1} parent=39 // pred_check
          %p865 = pneg %p161
        $region50: #{tpu_custom_call.1} parent=39 // pred_check_branch
          %867 = sbr.rel (%p865) target = $region52
        $region51: #{tpu_custom_call.1} parent=39 // pred_region
          %869 = vsyncadd %s861, 0
          %s870 = smul.addr %s23, 8
          %s871 = scalar_lea.hbm %s5, %s870
          %s873 = sshll.u32 %s864, 4
          %s874 = int_to_ptr.vmem [resolvable:$true] %s873
          %s875 = sshll.u32 %s871, 4
          %s876 = int_to_ptr.hbm [resolvable:$true] %s875
          %878 = dma.vmem_to_hbm [thread:$0]  %s874, 128, %s876, %s861
        $region52: #{tpu_custom_call.1} parent=39 // pred_fallthru
          _
      $region40: #{tpu_custom_call.1} parent=5 // pred_fallthru
        _
      %p879 = scmp.le.s32.totalorder 2, %s14
      // Predicated region
      $region53: #{tpu_custom_call.1} parent=5 // pred_check
        %p880 = pneg %p879
      $region54: #{tpu_custom_call.1} parent=5 // pred_check_branch
        %882 = sbr.rel (%p880) target = $region56
      $region55: #{tpu_custom_call.1} parent=5 // pred_region
        %s883 = ssub.s32 %s14, 2
        // Predicated region
        $region57: #{tpu_custom_call.1} parent=55 // pred_check
          %p884 = pneg %p167
        $region58: #{tpu_custom_call.1} parent=55 // pred_check_branch
          %886 = sbr.rel (%p884) target = $region60
        $region59: #{tpu_custom_call.1} parent=55 // pred_region
          %s887 = sand.u32 %s152, 1
          %s888 = scalar_lea.sflag [#allocation4], %s887
          %s889 = sand.u32 %s152, 1
          %s890 = smul.addr %s889, 8
          %s891 = scalar_lea.vmem [#allocation3], %s890
          %893 = dma.done %s888, 128
        $region60: #{tpu_custom_call.1} parent=55 // pred_fallthru
          _
      $region56: #{tpu_custom_call.1} parent=5 // pred_fallthru
        _
    $region6: #{tpu_custom_call.1} parent=1 // loop_footer
      %s18 = sadd.s32 1, %s14
    $region7: #{tpu_custom_call.1} parent=1 // loop_footer_branch
      %13 = sbr.rel target = $region3
    $region8: #{tpu_custom_call.1} parent=1 // loop_exit
      _
    %894 = vsyncpa [#allocation4], 1
    %s895 = scalar_lea.sflag [#allocation4], 1
    %896 = vsyncpa %s895, 1

</llo_original>
